<compile_context>
chip_gen: v7x
topology: tpu7x:2x2x1
jax: 0.10.0
libtpu: 0.0.40
codegen_flags: <defaults>
</compile_context>

<pallas_src>
import functools
import math

import jax
import jax.numpy as jnp
from jax.experimental import pallas as pl
from jax.experimental.pallas import tpu as pltpu

I_LIST = [33, 35, 53, 37, 73, 55, 57, 75, 77]


# --------------------------------------------------------------------------
# small host-side helpers
# --------------------------------------------------------------------------

def _cdiv(a, b):
    return -(-a // b)


def _round_up(a, m):
    return _cdiv(a, m) * m


def _vmem_capacity_bytes():
    try:
        return int(pltpu.get_tpu_info().vmem_capacity_bytes)
    except Exception:
        return 64 * 1024 * 1024          # v7x-safe fallback


def _vmem_limit(footprint, cap):
    lim = max(int(footprint * 1.4) + (8 << 20), 32 << 20)
    return min(lim, int(0.95 * cap))


def _pick_stage1_tiles(H, W, inc, C_tot, padding):
    """Lane-tile size for the fused 3x3 conv kernel (footprint is O(inc*tl))."""
    cap = _vmem_capacity_bytes()
    frac = 0.40 if cap <= (80 << 20) else 0.55          # v7x-like vs v5e/v6e
    budget = int(frac * cap)

    Wp = W + 2 * padding
    Hp = H + 2 * padding
    total_cols = Hp * Wp
    # need tl >= max tap offset (2*Wp+2) so taps fit inside [tile | next tile]
    tl_min = _round_up(max(2 * Wp + 2, 128), 128)
    tl = max(tl_min, min(1024, _round_up(total_cols, 128)))

    def foot(t):
        # A+B bf16 double-buffered + f32 out double-buffered + scratch + temps
        return t * (30 * inc + 16 * C_tot) + 40 * C_tot * inc + (1 << 20)

    while tl - 128 >= tl_min and foot(tl) > budget:
        tl -= 128
    n_ct = _cdiv(total_cols, tl)
    Hq = max(Hp, _cdiv(n_ct * tl, Wp))                  # pad rows so blocks fit
    return tl, n_ct, Hq, _vmem_limit(foot(tl), cap)


def _pick_stage2_tiles(M, K, outc):
    """(tk, nk, tm, w_resident, vmem_limit) for the rect matmul."""
    cap = _vmem_capacity_bytes()
    small_vmem = cap <= (80 << 20)                      # v7x-like (2 TCs)
    frac = 0.40 if small_vmem else 0.55
    budget = int(frac * cap)

    # contraction tile: whole K when it fits, else largest divisor <= 2048
    if K <= 2048:
        tk, nk = K, 1
    else:
        best, d = 1, 1
        while d * d <= K:
            if K % d == 0:
                for t in (d, K // d):
                    if t <= 2048 and t > best:
                        best = t
            d += 1
        tk, nk = best, K // best

    # keep >= 2 pixel tiles only on 2-TensorCore (small-VMEM) parts
    tm_cap = min(1024, _round_up(M, 128))
    if small_vmem and M > 128:
        tm_cap = min(tm_cap, max(128, _round_up(_cdiv(M, 2), 128)))
    tm_cap = max(tm_cap, 128)

    w_res = (4 * outc * K * 2) <= (budget // 4)         # resident W_rect fits?

    def foot(tm):
        w_term = 4 * outc * K if w_res else 4 * outc * tk
        return (4 * tk * tm            # xo bf16 double-buffered
                + w_term               # rect weights (bf16, 2 bufs)
                + 28 * outc * tm       # m, bias, out, acc, epilogue temps
                + (1 << 20))

    tm = tm_cap
    while tm > 128 and foot(tm) > budget:
        tm -= 128
    return tk, nk, tm, w_res, _vmem_limit(foot(tm), cap)


# --------------------------------------------------------------------------
# Pallas kernel builders (cached per static shape configuration)
# --------------------------------------------------------------------------

@functools.lru_cache(maxsize=None)
def _build_stage1(b, inc, C_tot, outc, tl, n_ct, Wp, vmem_limit):
    """Fused 3x3 stride-1 pad-1 conv for all 5 heads + activations.

    Works on the flattened padded image: output column t = h*Wp + w; tap
    (ki, kj) is a read at flattened offset ki*Wp + kj.  The image is passed
    twice; the second copy is indexed one tile ahead (clamped) to supply the
    halo.  The 9 taps are folded into one K=9*inc contraction.  Output layout
    is (features, pixels): lane-dense stores, no wrapper transpose.
    """
    taps = tuple(ki * Wp + kj for ki in range(3) for kj in range(3))

    def kernel(xa_ref, xb_ref, w_ref, bv_ref, o_ref, xcat_ref, ops_ref):
        # assemble [current tile | next tile] so tap slices never run out
        xcat_ref[:, :tl] = xa_ref[0]
        xcat_ref[:, tl:2 * tl] = xb_ref[0]
        # build the (9*inc, tl) shifted operand: row block t = tap t
        for t9, tap in enumerate(taps):
            ops_ref[t9 * inc:(t9 + 1) * inc, :] = xcat_ref[:, tap:tap + tl]
        y = jnp.dot(w_ref[...], ops_ref[...],
                    preferred_element_type=jnp.float32) + bv_ref[...]
        # fused epilogue, static row-range slices (EUP work only where needed)
        o_ref[0:outc, :] = jnp.tanh(y[0:outc, :])
        o_ref[outc:2 * outc, :] = y[outc:2 * outc, :]
        o_ref[2 * outc:2 * outc + 2, :] = (
            jax.nn.sigmoid(y[2 * outc:2 * outc + 2, :]) * 8.0 + 1.0)
        o_ref[2 * outc + 2:C_tot, :] = y[2 * outc + 2:C_tot, :]

    return pl.pallas_call(
        kernel,
        out_shape=jax.ShapeDtypeStruct((C_tot, b * n_ct * tl), jnp.float32),
        grid_spec=pltpu.PrefetchScalarGridSpec(
            num_scalar_prefetch=0,
            grid=(b, n_ct),
            in_specs=[
                # current tile
                pl.BlockSpec((1, inc, tl), lambda bi, ci: (bi, 0, ci)),
                # next tile (halo); clamped on the last tile — the duplicated
                # data is only ever read by pad/garbage output columns.
                pl.BlockSpec((1, inc, tl),
                             lambda bi, ci: (bi, 0,
                                             jnp.minimum(ci + 1, n_ct - 1))),
                pl.BlockSpec((C_tot, 9 * inc), lambda bi, ci: (0, 0)),
                pl.BlockSpec((C_tot, 1), lambda bi, ci: (0, 0)),
            ],
            out_specs=pl.BlockSpec((C_tot, tl),
                                   lambda bi, ci: (0, bi * n_ct + ci)),
            scratch_shapes=[
                pltpu.VMEM((inc, 2 * tl), jnp.bfloat16),
                pltpu.VMEM((9 * inc, tl), jnp.bfloat16),
            ],
        ),
        compiler_params=pltpu.CompilerParams(
            dimension_semantics=("parallel", "arbitrary"),
            vmem_limit_bytes=vmem_limit),
    )


@functools.lru_cache(maxsize=None)
def _build_stage2(M_pad, K, outc, nk, tk, tm, w_res, vmem_limit):
    """Rect conv as out^T = W_rect @ xo^T, K-tiled with an f32 accumulator,
    fused with the modulation `m * conv + bias`.  Output is (outc, pixels)."""
    nm = M_pad // tm

    def kernel(xo_ref, w_ref, br_ref, m_ref, bs_ref, o_ref, acc_ref):
        ki = pl.program_id(1)

        @pl.when(ki == 0)
        def _():
            acc_ref[...] = jnp.zeros_like(acc_ref)

        w_blk = w_ref[ki] if w_res else w_ref[0]
        acc_ref[...] += jnp.dot(w_blk, xo_ref[0],
                                preferred_element_type=jnp.float32)

        @pl.when(ki == nk - 1)
        def _():
            conv = acc_ref[...] + br_ref[...]
            o_ref[...] = m_ref[...] * conv + bs_ref[...]

    if w_res:
        w_spec = pl.BlockSpec((nk, outc, tk), lambda mi, ki: (0, 0, 0))
    else:
        w_spec = pl.BlockSpec((1, outc, tk), lambda mi, ki: (ki, 0, 0))

    # TODO(synk): on v7x, pipeline_mode=pl.Buffered(3) on the xo spec could
    # further hide DMA jitter once supported/verified on the target jax rev.
    return pl.pallas_call(
        kernel,
        out_shape=jax.ShapeDtypeStruct((outc, M_pad), jnp.float32),
        grid_spec=pltpu.PrefetchScalarGridSpec(
            num_scalar_prefetch=0,
            grid=(nm, nk),
            in_specs=[
                pl.BlockSpec((1, tk, tm), lambda mi, ki: (ki, 0, mi)),   # xo
                w_spec,                                                  # W
                pl.BlockSpec((outc, 1), lambda mi, ki: (0, 0)),          # b_rect
                pl.BlockSpec((outc, tm), lambda mi, ki: (0, mi)),        # m
                pl.BlockSpec((outc, tm), lambda mi, ki: (0, mi)),        # bias
            ],
            out_specs=pl.BlockSpec((outc, tm), lambda mi, ki: (0, mi)),
            scratch_shapes=[pltpu.VMEM((outc, tm), jnp.float32)],
        ),
        compiler_params=pltpu.CompilerParams(
            dimension_semantics=("parallel", "arbitrary"),
            vmem_limit_bytes=vmem_limit),
    )


# --------------------------------------------------------------------------
# parameter init (matches PyTorch Conv2d default init)
# --------------------------------------------------------------------------

def _conv_init(key, outc, inc, kh, kw):
    bound = 1.0 / math.sqrt(inc * kh * kw)
    kw_, kb_ = jax.random.split(key)
    w = jax.random.uniform(kw_, (outc, inc, kh, kw), jnp.float32, -bound, bound)
    b = jax.random.uniform(kb_, (outc,), jnp.float32, -bound, bound)
    return w, b


def init_params(key, inc, outc):
    keys = jax.random.split(key, 5 + len(I_LIST))
    p = {
        'm': _conv_init(keys[0], outc, inc, 3, 3),
        'b': _conv_init(keys[1], outc, inc, 3, 3),
        'l': _conv_init(keys[2], 1, inc, 3, 3),
        'w': _conv_init(keys[3], 1, inc, 3, 3),
        'theta': _conv_init(keys[4], 1, inc, 3, 3),
        'rect': {},
    }
    for idx, code in enumerate(I_LIST):
        p['rect'][code] = _conv_init(keys[5 + idx], outc, inc,
                                     code // 10, code % 10)
    return p


# --------------------------------------------------------------------------
# stage A: fused 3x3 convs + activations  (Pallas)
# --------------------------------------------------------------------------

@functools.partial(jax.jit, static_argnames=("padding",))
def _stage_a(conv_params, x, padding=1):
    b, inc, H, W = x.shape
    (wm, bm), (wb, bb), (wl, bl), (ww, bw), (wt, bt) = conv_params
    outc = wm.shape[0]
    C_tot = 2 * outc + 3
    Wp = W + 2 * padding

    tl, n_ct, Hq, vmem_limit = _pick_stage1_tiles(H, W, inc, C_tot, padding)

    w_all = jnp.concatenate([wm, wb, wl, ww, wt], axis=0)   # (C_tot, inc, 3, 3)
    b_all = jnp.concatenate([bm, bb, bl, bw, bt], axis=0)   # (C_tot,)
    # contraction layout: row = (ki*3+kj)*inc + c   (matches in-kernel concat)
    w9 = w_all.transpose(0, 2, 3, 1).reshape(C_tot, 9 * inc).astype(jnp.bfloat16)
    bvec = b_all.reshape(C_tot, 1).astype(jnp.float32)

    pad_bottom = Hq - H - padding                            # >= padding
    xpad = jnp.pad(x, ((0, 0), (0, 0), (padding, pad_bottom),
                       (padding, padding))).astype(jnp.bfloat16)
    xpad_flat = xpad.reshape(b, inc, Hq * Wp)

    call = _build_stage1(b, inc, C_tot, outc, tl, n_ct, Wp, vmem_limit)
    y = call(xpad_flat, xpad_flat, w9, bvec)                 # (C_tot, b*n_ct*tl)

    feats = (y.reshape(C_tot, b, n_ct * tl)[:, :, :H * Wp]
              .reshape(C_tot, b, H, Wp)[..., :W])            # (C_tot, b, H, W)
    M = b * H * W
    m_t = feats[:outc].reshape(outc, M)
    bias_t = feats[outc:2 * outc].reshape(outc, M)
    l = feats[2 * outc]                                      # (b, H, W)
    w_map = feats[2 * outc + 1]
    theta = feats[2 * outc + 2]
    return (xpad_flat, m_t, bias_t, l, w_map, theta,
            jnp.mean(l), jnp.mean(w_map))


# --------------------------------------------------------------------------
# stage B: bilinear sampling + rectangular conv (Pallas), cached per (N_X, N_Y)
# --------------------------------------------------------------------------

@functools.partial(jax.jit, static_argnames=("N_X", "N_Y", "padding", "stride"))
def _stage_b(w_rect, b_rect, xpad_flat, m_t, bias_t, l, w_map, theta,
             N_X, N_Y, padding=1, stride=1):
    b, H, W = l.shape
    inc = xpad_flat.shape[1]
    outc = m_t.shape[0]
    Hp, Wp = H + 2 * padding, W + 2 * padding
    N = N_X * N_Y
    K = inc * N
    M = b * H * W

    tk, nk, tm, w_res, vmem_limit = _pick_stage2_tiles(M, K, outc)
    M_pad = _round_up(M, tm)
    pad_m = M_pad - M
    f32 = jnp.float32

    # ---- sampling positions, built N-leading so the (K, M) layout comes out
    #      of the gather directly (no separate transpose pass over x_offset) --
    rx = jnp.arange(-(N_X - 1) // 2, (N_X - 1) // 2 + 1, dtype=f32)
    ry = jnp.arange(-(N_Y - 1) // 2, (N_Y - 1) // 2 + 1, dtype=f32)
    p_n_x = jnp.repeat(rx, N_Y).reshape(N, 1, 1, 1)          # n = kx*N_Y + ky
    p_n_y = jnp.tile(ry, N_X).reshape(N, 1, 1, 1)
    th = theta.reshape(1, b, H, W)
    ct, st = jnp.cos(th), jnp.sin(th)
    p_xx = p_n_x * ct - p_n_y * st                           # (N, b, H, W)
    p_yy = p_n_x * st + p_n_y * ct
    p0x = jnp.arange(1, H * stride + 1, stride, dtype=f32).reshape(1, 1, H, 1)
    p0y = jnp.arange(1, W * stride + 1, stride, dtype=f32).reshape(1, 1, 1, W)
    px = p0x + (l.reshape(1, b, H, W) / N_X) * p_xx
    py = p0y + (w_map.reshape(1, b, H, W) / N_Y) * p_yy

    flx, fly = jnp.floor(px), jnp.floor(py)
    q_lt_x = jnp.clip(flx, 0, Hp - 1).astype(jnp.int32)
    q_lt_y = jnp.clip(fly, 0, Wp - 1).astype(jnp.int32)
    q_rb_x = jnp.clip(flx + 1, 0, Hp - 1).astype(jnp.int32)
    q_rb_y = jnp.clip(fly + 1, 0, Wp - 1).astype(jnp.int32)
    pxc = jnp.clip(px, 0, Hp - 1)
    pyc = jnp.clip(py, 0, Wp - 1)
    fx, fy = q_lt_x.astype(f32), q_lt_y.astype(f32)
    gx, gy = q_rb_x.astype(f32), q_rb_y.astype(f32)
    g_lt = (1 + (fx - pxc)) * (1 + (fy - pyc))
    g_rb = (1 - (gx - pxc)) * (1 - (gy - pyc))
    g_lb = (1 + (fx - pxc)) * (1 - (gy - pyc))
    g_rt = (1 - (gx - pxc)) * (1 + (fy - pyc))

    # ---- flat gather source (inc, b*Hp*Wp), bf16 -----------------------------
    xsrc = (xpad_flat[:, :, :Hp * Wp].transpose(1, 0, 2)
            .reshape(inc, b * Hp * Wp))
    boff = jnp.repeat(jnp.arange(b, dtype=jnp.int32) * (Hp * Wp),
                      H * W).reshape(1, M)

    def pad_cols(a):
        return jnp.pad(a, ((0, 0), (0, pad_m))) if pad_m else a

    # TODO(synk): this 4-corner data-dependent gather stays in XLA; a manual
    # DMA Pallas gather (pl.ANY + make_async_copy with SMEM indices) feeding
    # the rect matmul directly would remove the remaining HBM round trip.
    def corner(qx, qy, g):
        idx = pad_cols(qx.reshape(N, M) * Wp + qy.reshape(N, M) + boff)
        xv = jnp.take(xsrc, idx, axis=1)                     # (inc, N, M_pad)
        return pad_cols(g.reshape(N, M))[None, :, :] * xv    # f32

    x_off = (corner(q_lt_x, q_lt_y, g_lt) + corner(q_rb_x, q_rb_y, g_rb)
             + corner(q_lt_x, q_rb_y, g_lb) + corner(q_rb_x, q_lt_y, g_rt))
    xo3 = x_off.astype(jnp.bfloat16).reshape(nk, tk, M_pad)  # (K, M) split

    w3 = (w_rect.reshape(outc, nk, tk).transpose(1, 0, 2)
                .astype(jnp.bfloat16))                       # (nk, outc, tk)
    br = b_rect.reshape(outc, 1).astype(jnp.float32)
    m_p = pad_cols(m_t)
    bs_p = pad_cols(bias_t)

    call = _build_stage2(M_pad, K, outc, nk, tk, tm, w_res, vmem_limit)
    out_t = call(xo3, w3, br, m_p, bs_p)                     # (outc, M_pad) f32
    return out_t[:, :M].reshape(outc, b, H, W).transpose(1, 0, 2, 3)


# --------------------------------------------------------------------------
# full forward
# --------------------------------------------------------------------------

def rect_conv2d_forward(params, x, epoch=0, label=None, nx=None, ny=None,
                        padding=1, stride=1):
    # epoch/label/nx/ny only affect PyTorch backward hooks; kept for parity.
    conv_params = (params['m'], params['b'], params['l'],
                   params['w'], params['theta'])
    x = x.astype(jnp.float32)
    (xpad_flat, m_t, bias_t, l, w_map, theta,
     mean_l, mean_w) = _stage_a(conv_params, x, padding=padding)

    # TODO(synk): data-dependent rect-kernel-size selection requires a
    # device->host sync + per-(N_X, N_Y) compile (cached via jit statics);
    # this matches the PyTorch module semantics.
    N_X = int(float(mean_l) // 1)
    N_Y = int(float(mean_w) // 1)
    if N_X % 2 == 0:
        N_X -= 1
    if N_Y % 2 == 0:
        N_Y -= 1
    N_X = max(N_X, 3)
    N_Y = max(N_Y, 3)

    w_rect, b_rect = params['rect'][N_X * 10 + N_Y]
    return _stage_b(w_rect, b_rect, xpad_flat, m_t, bias_t, l, w_map, theta,
                    N_X=N_X, N_Y=N_Y, padding=padding, stride=stride)


# --------------------------------------------------------------------------
# plain-JAX f32 reference (loose numerical cross-check)
# --------------------------------------------------------------------------

def _reference_forward(params, x, N_X, N_Y, padding=1, stride=1):
    b, inc, H, W = x.shape
    x = x.astype(jnp.float32)
    outc = params['m'][0].shape[0]

    def conv3(w, bb):
        y = jax.lax.conv_general_dilated(
            x, w, window_strides=(1, 1),
            padding=((padding, padding), (padding, padding)),
            dimension_numbers=("NCHW", "OIHW", "NCHW"))
        return y + bb[None, :, None, None]

    m = jnp.tanh(conv3(*params['m']))
    bias = conv3(*params['b'])
    l = jax.nn.sigmoid(conv3(*params['l'])) * 8 + 1
    w_map = jax.nn.sigmoid(conv3(*params['w'])) * 8 + 1
    theta = conv3(*params['theta'])

    Hp, Wp = H + 2 * padding, W + 2 * padding
    N = N_X * N_Y
    xpad = jnp.pad(x, ((0, 0), (0, 0), (padding, padding), (padding, padding)))
    xflat = xpad.reshape(b, inc, Hp * Wp)

    rng_x = jnp.arange(-(N_X - 1) // 2, (N_X - 1) // 2 + 1, dtype=jnp.float32)
    rng_y = jnp.arange(-(N_Y - 1) // 2, (N_Y - 1) // 2 + 1, dtype=jnp.float32)
    p_n_x = jnp.repeat(rng_x, N_Y)[None, :, None, None]
    p_n_y = jnp.tile(rng_y, N_X)[None, :, None, None]
    cos_t, sin_t = jnp.cos(theta), jnp.sin(theta)
    p_xx = p_n_x * cos_t - p_n_y * sin_t
    p_yy = p_n_x * sin_t + p_n_y * cos_t
    p0_x = jnp.arange(1, H * stride + 1, stride,
                      dtype=jnp.float32)[None, None, :, None]
    p0_y = jnp.arange(1, W * stride + 1, stride,
                      dtype=jnp.float32)[None, None, None, :]
    px = (p0_x + (l / N_X) * p_xx).transpose(0, 2, 3, 1)     # (b, H, W, N)
    py = (p0_y + (w_map / N_Y) * p_yy).transpose(0, 2, 3, 1)

    q_lt_x = jnp.clip(jnp.floor(px), 0, Hp - 1).astype(jnp.int32)
    q_lt_y = jnp.clip(jnp.floor(py), 0, Wp - 1).astype(jnp.int32)
    q_rb_x = jnp.clip(jnp.floor(px) + 1, 0, Hp - 1).astype(jnp.int32)
    q_rb_y = jnp.clip(jnp.floor(py) + 1, 0, Wp - 1).astype(jnp.int32)
    pxc = jnp.clip(px, 0, Hp - 1)
    pyc = jnp.clip(py, 0, Wp - 1)
    fx, fy = q_lt_x.astype(jnp.float32), q_lt_y.astype(jnp.float32)
    gx, gy = q_rb_x.astype(jnp.float32), q_rb_y.astype(jnp.float32)
    g_lt = (1 + (fx - pxc)) * (1 + (fy - pyc))
    g_rb = (1 - (gx - pxc)) * (1 - (gy - pyc))
    g_lb = (1 + (fx - pxc)) * (1 - (gy - pyc))
    g_rt = (1 - (gx - pxc)) * (1 + (fy - pyc))

    def gather(qx, qy):
        idx = (qx * Wp + qy).reshape(b, 1, H * W * N)
        idx = jnp.broadcast_to(idx, (b, inc, H * W * N))
        return jnp.take_along_axis(xflat, idx,
                                   axis=-1).reshape(b, inc, H, W, N)

    x_off = (g_lt[:, None] * gather(q_lt_x, q_lt_y)
             + g_rb[:, None] * gather(q_rb_x, q_rb_y)
             + g_lb[:, None] * gather(q_lt_x, q_rb_y)
             + g_rt[:, None] * gather(q_rb_x, q_lt_y))

    w_rect, b_rect = params['rect'][N_X * 10 + N_Y]
    conv = jnp.einsum('bchwn,ocn->bohw', x_off,
                      w_rect.reshape(outc, inc, N)) + b_rect[None, :, None, None]
    return m * conv + bias


if __name__ == "__main__":
    key = jax.random.PRNGKey(0)
    kx, kp = jax.random.split(key)
    inc, outc = 4, 4
    x = jax.random.normal(kx, (2, inc, 16, 16), dtype=jnp.float32)
    params = init_params(kp, inc, outc)

    out = rect_conv2d_forward(params, x, epoch=0, label=None, nx=None, ny=None)
    out = jax.block_until_ready(out)
    assert out.shape == (2, outc, 16, 16)
    assert bool(jnp.all(jnp.isfinite(out)))

    # same N_X/N_Y selection as the forward path, then cross-check vs the
    # plain-JAX f32 reference.  The kernel path runs stage-1 and the sampled
    # source in bf16, which slightly perturbs the sampling positions of a
    # white-noise image, so the tolerance is deliberately loose.
    conv_params = (params['m'], params['b'], params['l'],
                   params['w'], params['theta'])
    sa = _stage_a(conv_params, x, padding=1)
    mean_l, mean_w = float(sa[-2]), float(sa[-1])
    N_X = int(mean_l // 1)
    N_Y = int(mean_w // 1)
    if N_X % 2 == 0:
        N_X -= 1
    if N_Y % 2 == 0:
        N_Y -= 1
    N_X = max(N_X, 3)
    N_Y = max(N_Y, 3)
    ref = _reference_forward(params, x, N_X, N_Y)
    err = float(jnp.max(jnp.abs(out - ref)))
    assert err < 1e-1, f"max abs err vs reference: {err}"

    print("KERNEL_OK")
</pallas_src>

<mosaic_0001>
module attributes {stable_mosaic.version = 11 : i64} {
  func.func @kernel(%arg0: i32, %arg1: i32, %arg2: memref<1x4x384xbf16, #tpu.memory_space<vmem>>, %arg3: memref<1x4x384xbf16, #tpu.memory_space<vmem>>, %arg4: memref<11x36xbf16, #tpu.memory_space<vmem>>, %arg5: memref<11x1xf32, #tpu.memory_space<vmem>>, %arg6: memref<11x384xf32, #tpu.memory_space<vmem>>, %arg7: memref<4x768xbf16, #tpu.memory_space<vmem>>, %arg8: memref<36x384xbf16, #tpu.memory_space<vmem>>) attributes {dimension_semantics = [#tpu.dimension_semantics<parallel>, #tpu.dimension_semantics<arbitrary>], iteration_bounds = array<i64: 2, 1>, scalar_prefetch = 0 : i64, scratch_operands = 2 : i64, tpu.core_type = #tpu.core_type<tc>, window_params = [{transform_indices = @transform_0, window_bounds = array<i64: 1, 4, 384>}, {transform_indices = @transform_1, window_bounds = array<i64: 1, 4, 384>}, {pipeline_mode = #tpu.pipeline_mode<synchronous>, transform_indices = @transform_2, window_bounds = array<i64: 11, 36>}, {pipeline_mode = #tpu.pipeline_mode<synchronous>, transform_indices = @transform_3, window_bounds = array<i64: 11, 1>}, {transform_indices = @transform_4, window_bounds = array<i64: 11, 384>}]} {
    %c0 = arith.constant 0 : index
    %c0_0 = arith.constant 0 : index
    %c0_1 = arith.constant 0 : index
    %0 = vector.load %arg2[%c0, %c0_0, %c0_1] : memref<1x4x384xbf16, #tpu.memory_space<vmem>>, vector<1x4x384xbf16>
    %1 = vector.shape_cast %0 : vector<1x4x384xbf16> to vector<4x384xbf16>
    %c0_2 = arith.constant 0 : index
    %c0_3 = arith.constant 0 : index
    %2 = vector.load %arg7[%c0_2, %c0_3] : memref<4x768xbf16, #tpu.memory_space<vmem>>, vector<4x384xbf16>
    tpu.vector_store %arg7[%c0_2, %c0_3], %1 {strides = array<i32>} : memref<4x768xbf16, #tpu.memory_space<vmem>>, vector<4x384xbf16>,
    %c0_4 = arith.constant 0 : index
    %c0_5 = arith.constant 0 : index
    %c0_6 = arith.constant 0 : index
    %3 = vector.load %arg3[%c0_4, %c0_5, %c0_6] : memref<1x4x384xbf16, #tpu.memory_space<vmem>>, vector<1x4x384xbf16>
    %4 = vector.shape_cast %3 : vector<1x4x384xbf16> to vector<4x384xbf16>
    %c0_7 = arith.constant 0 : index
    %c384 = arith.constant 384 : index
    %5 = vector.load %arg7[%c0_7, %c384] : memref<4x768xbf16, #tpu.memory_space<vmem>>, vector<4x384xbf16>
    tpu.vector_store %arg7[%c0_7, %c384], %4 {strides = array<i32>} : memref<4x768xbf16, #tpu.memory_space<vmem>>, vector<4x384xbf16>,
    %c0_8 = arith.constant 0 : index
    %c0_9 = arith.constant 0 : index
    %6 = vector.load %arg7[%c0_8, %c0_9] : memref<4x768xbf16, #tpu.memory_space<vmem>>, vector<4x384xbf16>
    %c0_10 = arith.constant 0 : index
    %c0_11 = arith.constant 0 : index
    %7 = vector.load %arg8[%c0_10, %c0_11] : memref<36x384xbf16, #tpu.memory_space<vmem>>, vector<4x384xbf16>
    tpu.vector_store %arg8[%c0_10, %c0_11], %6 {strides = array<i32>} : memref<36x384xbf16, #tpu.memory_space<vmem>>, vector<4x384xbf16>,
    %c0_12 = arith.constant 0 : index
    %c1 = arith.constant 1 : index
    %8 = vector.load %arg7[%c0_12, %c1] : memref<4x768xbf16, #tpu.memory_space<vmem>>, vector<4x384xbf16>
    %c4 = arith.constant 4 : index
    %c0_13 = arith.constant 0 : index
    %9 = vector.load %arg8[%c4, %c0_13] : memref<36x384xbf16, #tpu.memory_space<vmem>>, vector<4x384xbf16>
    tpu.vector_store %arg8[%c4, %c0_13], %8 {strides = array<i32>} : memref<36x384xbf16, #tpu.memory_space<vmem>>, vector<4x384xbf16>,
    %c0_14 = arith.constant 0 : index
    %c2 = arith.constant 2 : index
    %10 = vector.load %arg7[%c0_14, %c2] : memref<4x768xbf16, #tpu.memory_space<vmem>>, vector<4x384xbf16>
    %c8 = arith.constant 8 : index
    %c0_15 = arith.constant 0 : index
    %11 = vector.load %arg8[%c8, %c0_15] : memref<36x384xbf16, #tpu.memory_space<vmem>>, vector<4x384xbf16>
    tpu.vector_store %arg8[%c8, %c0_15], %10 {strides = array<i32>} : memref<36x384xbf16, #tpu.memory_space<vmem>>, vector<4x384xbf16>,
    %c0_16 = arith.constant 0 : index
    %c18 = arith.constant 18 : index
    %12 = vector.load %arg7[%c0_16, %c18] : memref<4x768xbf16, #tpu.memory_space<vmem>>, vector<4x384xbf16>
    %c12 = arith.constant 12 : index
    %c0_17 = arith.constant 0 : index
    %13 = vector.load %arg8[%c12, %c0_17] : memref<36x384xbf16, #tpu.memory_space<vmem>>, vector<4x384xbf16>
    tpu.vector_store %arg8[%c12, %c0_17], %12 {strides = array<i32>} : memref<36x384xbf16, #tpu.memory_space<vmem>>, vector<4x384xbf16>,
    %c0_18 = arith.constant 0 : index
    %c19 = arith.constant 19 : index
    %14 = vector.load %arg7[%c0_18, %c19] : memref<4x768xbf16, #tpu.memory_space<vmem>>, vector<4x384xbf16>
    %c16 = arith.constant 16 : index
    %c0_19 = arith.constant 0 : index
    %15 = vector.load %arg8[%c16, %c0_19] : memref<36x384xbf16, #tpu.memory_space<vmem>>, vector<4x384xbf16>
    tpu.vector_store %arg8[%c16, %c0_19], %14 {strides = array<i32>} : memref<36x384xbf16, #tpu.memory_space<vmem>>, vector<4x384xbf16>,
    %c0_20 = arith.constant 0 : index
    %c20 = arith.constant 20 : index
    %16 = vector.load %arg7[%c0_20, %c20] : memref<4x768xbf16, #tpu.memory_space<vmem>>, vector<4x384xbf16>
    %c20_21 = arith.constant 20 : index
    %c0_22 = arith.constant 0 : index
    %17 = vector.load %arg8[%c20_21, %c0_22] : memref<36x384xbf16, #tpu.memory_space<vmem>>, vector<4x384xbf16>
    tpu.vector_store %arg8[%c20_21, %c0_22], %16 {strides = array<i32>} : memref<36x384xbf16, #tpu.memory_space<vmem>>, vector<4x384xbf16>,
    %c0_23 = arith.constant 0 : index
    %c36 = arith.constant 36 : index
    %18 = vector.load %arg7[%c0_23, %c36] : memref<4x768xbf16, #tpu.memory_space<vmem>>, vector<4x384xbf16>
    %c24 = arith.constant 24 : index
    %c0_24 = arith.constant 0 : index
    %19 = vector.load %arg8[%c24, %c0_24] : memref<36x384xbf16, #tpu.memory_space<vmem>>, vector<4x384xbf16>
    tpu.vector_store %arg8[%c24, %c0_24], %18 {strides = array<i32>} : memref<36x384xbf16, #tpu.memory_space<vmem>>, vector<4x384xbf16>,
    %c0_25 = arith.constant 0 : index
    %c37 = arith.constant 37 : index
    %20 = vector.load %arg7[%c0_25, %c37] : memref<4x768xbf16, #tpu.memory_space<vmem>>, vector<4x384xbf16>
    %c28 = arith.constant 28 : index
    %c0_26 = arith.constant 0 : index
    %21 = vector.load %arg8[%c28, %c0_26] : memref<36x384xbf16, #tpu.memory_space<vmem>>, vector<4x384xbf16>
    tpu.vector_store %arg8[%c28, %c0_26], %20 {strides = array<i32>} : memref<36x384xbf16, #tpu.memory_space<vmem>>, vector<4x384xbf16>,
    %c0_27 = arith.constant 0 : index
    %c38 = arith.constant 38 : index
    %22 = vector.load %arg7[%c0_27, %c38] : memref<4x768xbf16, #tpu.memory_space<vmem>>, vector<4x384xbf16>
    %c32 = arith.constant 32 : index
    %c0_28 = arith.constant 0 : index
    %23 = vector.load %arg8[%c32, %c0_28] : memref<36x384xbf16, #tpu.memory_space<vmem>>, vector<4x384xbf16>
    tpu.vector_store %arg8[%c32, %c0_28], %22 {strides = array<i32>} : memref<36x384xbf16, #tpu.memory_space<vmem>>, vector<4x384xbf16>,
    %c0_29 = arith.constant 0 : index
    %c0_30 = arith.constant 0 : index
    %24 = vector.load %arg4[%c0_29, %c0_30] : memref<11x36xbf16, #tpu.memory_space<vmem>>, vector<11x36xbf16>
    %c0_31 = arith.constant 0 : index
    %c0_32 = arith.constant 0 : index
    %25 = vector.load %arg8[%c0_31, %c0_32] : memref<36x384xbf16, #tpu.memory_space<vmem>>, vector<36x384xbf16>
    %cst = arith.constant dense<0.000000e+00> : vector<11x384xf32>
    %26 = tpu.matmul %24, %25, %cst {dimension_numbers = #tpu.dot_dimension_numbers<[1], [0], [0], [1], [0, 0, 1, 1], [], []>} : vector<11x36xbf16>, vector<36x384xbf16>, vector<11x384xf32> -> vector<11x384xf32>
    %c0_33 = arith.constant 0 : index
    %c0_34 = arith.constant 0 : index
    %27 = vector.load %arg5[%c0_33, %c0_34] : memref<11x1xf32, #tpu.memory_space<vmem>>, vector<11x1xf32>
    %28 = vector.broadcast %27 : vector<11x1xf32> to vector<11x384xf32>
    %29 = arith.addf %26, %28 : vector<11x384xf32>
    %30 = vector.extract_strided_slice %29 {offsets = [0, 0], sizes = [4, 384], strides = [1, 1]} : vector<11x384xf32> to vector<4x384xf32>
    %31 = math.tanh %30 : vector<4x384xf32>
    %c0_35 = arith.constant 0 : index
    %c0_36 = arith.constant 0 : index
    %32 = vector.load %arg6[%c0_35, %c0_36] : memref<11x384xf32, #tpu.memory_space<vmem>>, vector<4x384xf32>
    tpu.vector_store %arg6[%c0_35, %c0_36], %31 {strides = array<i32>} : memref<11x384xf32, #tpu.memory_space<vmem>>, vector<4x384xf32>,
    %33 = vector.extract_strided_slice %29 {offsets = [4, 0], sizes = [4, 384], strides = [1, 1]} : vector<11x384xf32> to vector<4x384xf32>
    %c4_37 = arith.constant 4 : index
    %c0_38 = arith.constant 0 : index
    %34 = vector.load %arg6[%c4_37, %c0_38] : memref<11x384xf32, #tpu.memory_space<vmem>>, vector<4x384xf32>
    tpu.vector_store %arg6[%c4_37, %c0_38], %33 {strides = array<i32>} : memref<11x384xf32, #tpu.memory_space<vmem>>, vector<4x384xf32>,
    %35 = vector.extract_strided_slice %29 {offsets = [8, 0], sizes = [2, 384], strides = [1, 1]} : vector<11x384xf32> to vector<2x384xf32>
    %36 = arith.negf %35 : vector<2x384xf32>
    %37 = math.exp %36 : vector<2x384xf32>
    %cst_39 = arith.constant 1.000000e+00 : f32
    %38 = vector.broadcast %cst_39 : f32 to vector<2x384xf32>
    %39 = arith.addf %38, %37 : vector<2x384xf32>
    %40 = arith.divf %38, %39 : vector<2x384xf32>
    %cst_40 = arith.constant 8.000000e+00 : f32
    %41 = vector.broadcast %cst_40 : f32 to vector<2x384xf32>
    %42 = arith.mulf %40, %41 : vector<2x384xf32>
    %cst_41 = arith.constant 1.000000e+00 : f32
    %43 = vector.broadcast %cst_41 : f32 to vector<2x384xf32>
    %44 = arith.addf %42, %43 : vector<2x384xf32>
    %c8_42 = arith.constant 8 : index
    %c0_43 = arith.constant 0 : index
    %45 = vector.load %arg6[%c8_42, %c0_43] : memref<11x384xf32, #tpu.memory_space<vmem>>, vector<2x384xf32>
    tpu.vector_store %arg6[%c8_42, %c0_43], %44 {strides = array<i32>} : memref<11x384xf32, #tpu.memory_space<vmem>>, vector<2x384xf32>,
    %46 = vector.extract_strided_slice %29 {offsets = [10, 0], sizes = [1, 384], strides = [1, 1]} : vector<11x384xf32> to vector<1x384xf32>
    %c10 = arith.constant 10 : index
    %c0_44 = arith.constant 0 : index
    %47 = vector.load %arg6[%c10, %c0_44] : memref<11x384xf32, #tpu.memory_space<vmem>>, vector<1x384xf32>
    tpu.vector_store %arg6[%c10, %c0_44], %46 {strides = array<i32>} : memref<11x384xf32, #tpu.memory_space<vmem>>, vector<1x384xf32>,
    return
  }
  func.func @transform_0(%arg0: i32, %arg1: i32) -> (i32, i32, i32) {
    %c0_i32 = arith.constant 0 : i32
    %c0_i32_0 = arith.constant 0 : i32
    return %arg0, %c0_i32, %arg1 : i32, i32, i32
  }
  func.func @transform_1(%arg0: i32, %arg1: i32) -> (i32, i32, i32) {
    %c1_i32 = arith.constant 1 : i32
    %0 = arith.addi %arg1, %c1_i32 : i32
    %c0_i32 = arith.constant 0 : i32
    %1 = arith.minsi %0, %c0_i32 : i32
    %c0_i32_0 = arith.constant 0 : i32
    %c0_i32_1 = arith.constant 0 : i32
    return %arg0, %c0_i32_0, %1 : i32, i32, i32
  }
  func.func @transform_2(%arg0: i32, %arg1: i32) -> (i32, i32) {
    %c0_i32 = arith.constant 0 : i32
    %c0_i32_0 = arith.constant 0 : i32
    %c0_i32_1 = arith.constant 0 : i32
    return %c0_i32, %c0_i32_0 : i32, i32
  }
  func.func @transform_3(%arg0: i32, %arg1: i32) -> (i32, i32) {
    %c0_i32 = arith.constant 0 : i32
    %c0_i32_0 = arith.constant 0 : i32
    %c0_i32_1 = arith.constant 0 : i32
    return %c0_i32, %c0_i32_0 : i32, i32
  }
  func.func @transform_4(%arg0: i32, %arg1: i32) -> (i32, i32) {
    %c1_i32 = arith.constant 1 : i32
    %0 = arith.muli %arg0, %c1_i32 : i32
    %1 = arith.addi %0, %arg1 : i32
    %c0_i32 = arith.constant 0 : i32
    %c0_i32_0 = arith.constant 0 : i32
    return %c0_i32, %1 : i32, i32
  }
}

</mosaic_0001>

<llo_original>
// kernel: _stage_a.1
$region0: #{_stage_a.1}
  #allocation0 [shape = 'u32[]', space=smem, size = 0x4, offset = 0x4, fixed_abs, tag = 'smem constant byte address 0x4 - core index']
  #allocation1 [shape = 'u32[144,128]{1,0:T(1,128)}', space=vmem, size = 0x12000, scoped, tag = 'internal scratch']
  #allocation2 [shape = 'bf16[4,768]{1,0:T(4,128)(2,1)}', space=vmem, size = 0x1800, scoped, tag = 'scratch operand']
  #allocation3 [shape = 'bf16[36,384]{1,0:T(8,128)(2,1)}', space=vmem, size = 0x7800, scoped, tag = 'scratch operand']
  %s0 = inlined_call_operand.vmem [shape: bf16[2,4,396], index: 0, kind: input, shape index: {}, may-alias: {0,1}]
  %s1 = inlined_call_operand.vmem [shape: bf16[2,4,396], index: 1, kind: input, shape index: {}, may-alias: {0,1}]
  %s2 = inlined_call_operand.vmem [shape: bf16[11,36], index: 2, kind: input, shape index: {}]
  %s3 = inlined_call_operand.vmem [shape: f32[11,1], index: 3, kind: input, shape index: {}]
  %s4 = inlined_call_operand.vmem [shape: f32[11,768], index: 4, kind: output, shape index: {}]
  %s5 = sld [smem:[#allocation0]]
  $region68: #{_stage_a.1} parent=0
    _
  %s7 = ssub.s32 1, %s5
  %s8 = scalar_select 0, %s7, %s5
  $region1: #{_stage_a.1} parent=0
    #allocation4 [shape = 'u8[49152]{0}', space=vmem, size = 0xc000, scoped, tag = 'output window, operand 0']
    loop: start=0, step=1, limit=4
    $region2: #{_stage_a.1} parent=1 // loop_pre_header
      _
    $region3: #{_stage_a.1} parent=1 // loop_header
      %s10 = sphi 0, %s14
      %p11 = scmp.ge.s32.totalorder %s10, 4
      %s17 = sphi 0, %s29
      %s18 = sphi 0, %s25
      %s19 = sphi 0, %s17
      %s20 = sphi 0, %s18
      %s21 = sphi 0, %s19
      %s22 = sphi 0, %s20
      %s34 = sphi 0, %s36
      %s37 = sphi 0, %s34
      %s38 = sphi 0, %s37
      %s54 = sphi 0, %s38
      %s68 = sphi 0, %s70
      %s71 = sphi 0, %s68
      %s72 = sphi 0, %s71
      %s88 = sphi 0, %s72
      %s92 = sphi 0, %s92
      %s94 = sphi 0, %s92
      %s95 = sphi 0, %s94
      %s109 = sphi 0, %s95
      %s113 = sphi 0, %s113
      %s115 = sphi 0, %s113
      %s116 = sphi 0, %s115
      %s130 = sphi 0, %s116
      %s138 = sphi 0, %s140
      %s141 = sphi 0, %s138
      %s142 = sphi 0, %s141
      %s158 = sphi 0, %s142
    $region4: #{_stage_a.1} parent=1 // loop_header_branch
      %13 = sbr.rel (%p11) target = $region8
    $region5: #{_stage_a.1} parent=1 // loop_body
      %s15 = ssub.s32 %s10, 1
      %s16 = ssub.s32 %s10, 2
      %s23 = sadd.s32 1, %s18
      %p24 = scmp.ge.s32.totalorder %s23, 1
      %s25 = scalar_select %p24, 0, %s23
      %s26 = sadd.s32 1, %s17
      %s27 = scalar_select %p24, %s26, %s17
      %p28 = scmp.ge.s32.totalorder %s27, 2
      %s29 = scalar_select %p28, 0, %s27
      %s30 = ssub.s32 %s17, %s29
      %s31 = ssub.s32 %s18, %s25
      %s32 = sor.u32 %s30, %s31
      %p33 = scmp.eq.s32.totalorder %s32, 0
      %s35 = sadd.s32 %s34, 1
      %s36 = scalar_select %p33, %s34, %s35
      %p39 = pneg %p33
      %p40 = scmp.eq.s32.totalorder %s10, 1
      %p41 = por %p39, %p40
      %p42 = scmp.ne.s32.totalorder %s34, %s37
      %p43 = scmp.eq.s32.totalorder %s10, 0
      %p44 = por %p42, %p43
      %p45 = scmp.ne.s32.totalorder %s34, %s37
      %p46 = scmp.eq.s32.totalorder %s15, 1
      %p47 = por %p45, %p46
      %p48 = scmp.ne.s32.totalorder %s37, %s38
      %p49 = scmp.eq.s32.totalorder %s15, 0
      %p50 = por %p48, %p49
      %p51 = scmp.ne.s32.totalorder %s37, %s38
      %p52 = scmp.eq.s32.totalorder %s16, 1
      %p53 = por %p51, %p52
      %p55 = scmp.ne.s32.totalorder %s38, %s54
      %p56 = scmp.eq.s32.totalorder %s16, 0
      %p57 = por %p55, %p56
      %s58 = sadd.s32 %s18, 1
      %p59 = scmp.lt.s32.totalorder %s58, 0
      %s60 = scalar_select %p59, %s58, 0
      %s61 = sadd.s32 %s25, 1
      %p62 = scmp.lt.s32.totalorder %s61, 0
      %s63 = scalar_select %p62, %s61, 0
      %s64 = ssub.s32 %s17, %s29
      %s65 = ssub.s32 %s60, %s63
      %s66 = sor.u32 %s64, %s65
      %p67 = scmp.eq.s32.totalorder %s66, 0
      %s69 = sadd.s32 %s68, 1
      %s70 = scalar_select %p67, %s68, %s69
      %p73 = pneg %p67
      %p74 = scmp.eq.s32.totalorder %s10, 1
      %p75 = por %p73, %p74
      %p76 = scmp.ne.s32.totalorder %s68, %s71
      %p77 = scmp.eq.s32.totalorder %s10, 0
      %p78 = por %p76, %p77
      %p79 = scmp.ne.s32.totalorder %s68, %s71
      %p80 = scmp.eq.s32.totalorder %s15, 1
      %p81 = por %p79, %p80
      %p82 = scmp.ne.s32.totalorder %s71, %s72
      %p83 = scmp.eq.s32.totalorder %s15, 0
      %p84 = por %p82, %p83
      %p85 = scmp.ne.s32.totalorder %s71, %s72
      %p86 = scmp.eq.s32.totalorder %s16, 1
      %p87 = por %p85, %p86
      %p89 = scmp.ne.s32.totalorder %s72, %s88
      %p90 = scmp.eq.s32.totalorder %s16, 0
      %p91 = por %p89, %p90
      %s93 = sadd.s32 %s92, 1
      %p96 = scmp.eq.s32.totalorder %s10, 1
      %p97 = scmp.ne.s32.totalorder %s92, %s94
      %p98 = scmp.eq.s32.totalorder %s10, 0
      %p99 = por %p97, %p98
      %p100 = scmp.ne.s32.totalorder %s92, %s94
      %p101 = scmp.eq.s32.totalorder %s15, 1
      %p102 = por %p100, %p101
      %p103 = scmp.ne.s32.totalorder %s94, %s95
      %p104 = scmp.eq.s32.totalorder %s15, 0
      %p105 = por %p103, %p104
      %p106 = scmp.ne.s32.totalorder %s94, %s95
      %p107 = scmp.eq.s32.totalorder %s16, 1
      %p108 = por %p106, %p107
      %p110 = scmp.ne.s32.totalorder %s95, %s109
      %p111 = scmp.eq.s32.totalorder %s16, 0
      %p112 = por %p110, %p111
      %s114 = sadd.s32 %s113, 1
      %p117 = scmp.eq.s32.totalorder %s10, 1
      %p118 = scmp.ne.s32.totalorder %s113, %s115
      %p119 = scmp.eq.s32.totalorder %s10, 0
      %p120 = por %p118, %p119
      %p121 = scmp.ne.s32.totalorder %s113, %s115
      %p122 = scmp.eq.s32.totalorder %s15, 1
      %p123 = por %p121, %p122
      %p124 = scmp.ne.s32.totalorder %s115, %s116
      %p125 = scmp.eq.s32.totalorder %s15, 0
      %p126 = por %p124, %p125
      %p127 = scmp.ne.s32.totalorder %s115, %s116
      %p128 = scmp.eq.s32.totalorder %s16, 1
      %p129 = por %p127, %p128
      %p131 = scmp.ne.s32.totalorder %s116, %s130
      %p132 = scmp.eq.s32.totalorder %s16, 0
      %p133 = por %p131, %p132
      %s134 = sadd.s32 %s17, %s18
      %s135 = sadd.s32 %s29, %s25
      %s136 = ssub.s32 %s134, %s135
      %p137 = scmp.eq.s32.totalorder %s136, 0
      %s139 = sadd.s32 %s138, 1
      %s140 = scalar_select %p137, %s138, %s139
      %p143 = pneg %p137
      %p144 = scmp.eq.s32.totalorder %s10, 1
      %p145 = por %p143, %p144
      %p146 = scmp.ne.s32.totalorder %s138, %s141
      %p147 = scmp.eq.s32.totalorder %s10, 0
      %p148 = por %p146, %p147
      %p149 = scmp.ne.s32.totalorder %s138, %s141
      %p150 = scmp.eq.s32.totalorder %s15, 1
      %p151 = por %p149, %p150
      %p152 = scmp.ne.s32.totalorder %s141, %s142
      %p153 = scmp.eq.s32.totalorder %s15, 0
      %p154 = por %p152, %p153
      %p155 = scmp.ne.s32.totalorder %s141, %s142
      %p156 = scmp.eq.s32.totalorder %s16, 1
      %p157 = por %p155, %p156
      %p159 = scmp.ne.s32.totalorder %s142, %s158
      %p160 = scmp.eq.s32.totalorder %s16, 0
      %p161 = por %p159, %p160
      %p162 = scmp.le.s32.totalorder 1, %s10
      %p163 = scmp.lt.s32.totalorder %s10, 3
      %p164 = pnand %p162, %p163
      %p165 = pneg %p164
      // Predicated region
      $region9: #{_stage_a.1} parent=5 // pred_check
        _
      $region10: #{_stage_a.1} parent=5 // pred_check_branch
        %167 = sbr.rel (%p164) target = $region12
      $region11: #{_stage_a.1} parent=5 // pred_region
        %s168 = ssub.s32 %s10, 1
        // Predicated region
        $region13: #{_stage_a.1} parent=11 // pred_check
          %p169 = pneg %p105
        $region14: #{_stage_a.1} parent=11 // pred_check_branch
          %171 = sbr.rel (%p169) target = $region16
        $region15: #{_stage_a.1} parent=11 // pred_region
          _
        $region16: #{_stage_a.1} parent=11 // pred_fallthru
          _
        // Predicated region
        $region17: #{_stage_a.1} parent=11 // pred_check
          %p172 = pneg %p126
        $region18: #{_stage_a.1} parent=11 // pred_check_branch
          %174 = sbr.rel (%p172) target = $region20
        $region19: #{_stage_a.1} parent=11 // pred_region
          _
        $region20: #{_stage_a.1} parent=11 // pred_fallthru
          _
      $region12: #{_stage_a.1} parent=5 // pred_fallthru
        _
      %p175 = scmp.lt.s32.totalorder %s10, 2
      // Predicated region
      $region21: #{_stage_a.1} parent=5 // pred_check
        %p176 = pneg %p175
      $region22: #{_stage_a.1} parent=5 // pred_check_branch
        %178 = sbr.rel (%p176) target = $region24
      $region23: #{_stage_a.1} parent=5 // pred_region
        // Predicated region
        $region25: #{_stage_a.1} parent=23 // pred_check
          %p179 = pneg %p44
        $region26: #{_stage_a.1} parent=23 // pred_check_branch
          %181 = sbr.rel (%p179) target = $region28
        $region27: #{_stage_a.1} parent=23 // pred_region
          %s182 = smul.u32 3, %s18
          %s183 = ssub.s32 4, %s182
          %p184 = scmp.lt.s32.totalorder %s183, 3
          %s185 = scalar_select %p184, %s183, 3
          %s186 = smul.u32 32, %s185
          %p187 = scmp.lt.s32.totalorder %s17, 1
          %s188 = scalar_select %p187, %s17, 1
          %p189 = scmp.lt.s32.totalorder %s182, 3
          %s190 = scalar_select %p189, %s182, 3
          %s191 = smul.addr %s188, 4
          %s192 = sadd.s32 %s190, %s191
          %s193 = smul.addr %s192, 2
          %s194 = scalar_lea.vmem %s0, %s193
          %s195 = smul.u32 3, %s18
          %s196 = ssub.s32 4, %s195
          %p197 = scmp.lt.s32.totalorder %s196, 3
          %s198 = scalar_select %p197, %s196, 3
          %s199 = smul.u32 32, %s198
        $region28: #{_stage_a.1} parent=23 // pred_fallthru
          _
        // Predicated region
        $region29: #{_stage_a.1} parent=23 // pred_check
          %p200 = pneg %p78
        $region30: #{_stage_a.1} parent=23 // pred_check_branch
          %202 = sbr.rel (%p200) target = $region32
        $region31: #{_stage_a.1} parent=23 // pred_region
          %s203 = sadd.s32 %s18, 1
          %p204 = scmp.lt.s32.totalorder %s203, 0
          %s205 = scalar_select %p204, %s203, 0
          %s206 = smul.u32 3, %s205
          %s207 = ssub.s32 4, %s206
          %p208 = scmp.lt.s32.totalorder %s207, 3
          %s209 = scalar_select %p208, %s207, 3
          %s210 = smul.u32 32, %s209
          %p211 = scmp.lt.s32.totalorder %s17, 1
          %s212 = scalar_select %p211, %s17, 1
          %p213 = scmp.lt.s32.totalorder %s206, 3
          %s214 = scalar_select %p213, %s206, 3
          %s215 = smul.addr %s212, 4
          %s216 = sadd.s32 %s214, %s215
          %s217 = smul.addr %s216, 2
          %s218 = scalar_lea.vmem %s1, %s217
          %s219 = sadd.s32 %s18, 1
          %p220 = scmp.lt.s32.totalorder %s219, 0
          %s221 = scalar_select %p220, %s219, 0
          %s222 = smul.u32 3, %s221
          %s223 = ssub.s32 4, %s222
          %p224 = scmp.lt.s32.totalorder %s223, 3
          %s225 = scalar_select %p224, %s223, 3
          %s226 = smul.u32 32, %s225
        $region32: #{_stage_a.1} parent=23 // pred_fallthru
          _
      $region24: #{_stage_a.1} parent=5 // pred_fallthru
        _
      %p227 = scmp.le.s32.totalorder 1, %s10
      %p228 = scmp.lt.s32.totalorder %s10, 3
      %p229 = pnand %p227, %p228
      %p230 = pneg %p229
      // Predicated region
      $region33: #{_stage_a.1} parent=5 // pred_check
        _
      $region34: #{_stage_a.1} parent=5 // pred_check_branch
        %232 = sbr.rel (%p229) target = $region36
      $region35: #{_stage_a.1} parent=5 // pred_region
        %s233 = ssub.s32 %s10, 1
        %s234 = smul.u32 3, %s20
        %s235 = ssub.s32 4, %s234
        %p236 = scmp.lt.s32.totalorder %s235, 3
        %s237 = scalar_select %p236, %s235, 3
        %s238 = smul.u32 32, %s237
        %p239 = scmp.lt.s32.totalorder %s19, 1
        %s240 = scalar_select %p239, %s19, 1
        %p241 = scmp.lt.s32.totalorder %s234, 3
        %s242 = scalar_select %p241, %s234, 3
        %s243 = smul.addr %s240, 4
        %s244 = sadd.s32 %s242, %s243
        %s245 = smul.addr %s244, 2
        %s246 = scalar_lea.vmem %s0, %s245
        %p247 = pneg %p50
        %p248 = pneg %p47
        %s249 = sadd.s32 %s20, 1
        %p250 = scmp.lt.s32.totalorder %s249, 0
        %s251 = scalar_select %p250, %s249, 0
        %s252 = smul.u32 3, %s251
        %s253 = ssub.s32 4, %s252
        %p254 = scmp.lt.s32.totalorder %s253, 3
        %s255 = scalar_select %p254, %s253, 3
        %s256 = smul.u32 32, %s255
        %p257 = scmp.lt.s32.totalorder %s19, 1
        %s258 = scalar_select %p257, %s19, 1
        %p259 = scmp.lt.s32.totalorder %s252, 3
        %s260 = scalar_select %p259, %s252, 3
        %s261 = smul.addr %s258, 4
        %s262 = sadd.s32 %s260, %s261
        %s263 = smul.addr %s262, 2
        %s264 = scalar_lea.vmem %s1, %s263
        %p265 = pneg %p84
        %p266 = pneg %p81
        %p267 = pneg %p105
        %p268 = pneg %p102
        %p269 = pneg %p126
        %p270 = pneg %p123
        %p271 = pneg %p154
        %p272 = pneg %p151
        %s273 = sand.u32 %s141, 1
        %s274 = sand.u32 %s141, 1
        %s275 = smul.addr %s274, 48
        %s276 = scalar_lea.vmem [#allocation4], %s275
        %s277 = smul.u32 3, %s20
        %s278 = ssub.s32 4, %s277
        %p279 = scmp.lt.s32.totalorder %s278, 3
        %s280 = scalar_select %p279, %s278, 3
        %s281 = smul.u32 32, %s280
        %p282 = scmp.lt.s32.totalorder %s19, 1
        %s283 = scalar_select %p282, %s19, 1
        %p284 = scmp.lt.s32.totalorder %s277, 3
        %s285 = scalar_select %p284, %s277, 3
        %s286 = smul.addr %s283, 4
        %s287 = sadd.s32 %s285, %s286
        %s288 = smul.addr %s287, 2
        %s289 = scalar_lea.vmem %s0, %s288
        %s290 = smul.u32 3, %s20
        %s291 = ssub.s32 4, %s290
        %p292 = scmp.lt.s32.totalorder %s291, 3
        %s293 = scalar_select %p292, %s291, 3
        %s294 = smul.u32 32, %s293
        %s295 = sadd.s32 %s20, 1
        %p296 = scmp.lt.s32.totalorder %s295, 0
        %s297 = scalar_select %p296, %s295, 0
        %s298 = smul.u32 3, %s297
        %s299 = ssub.s32 4, %s298
        %p300 = scmp.lt.s32.totalorder %s299, 3
        %s301 = scalar_select %p300, %s299, 3
        %s302 = smul.u32 32, %s301
        %p303 = scmp.lt.s32.totalorder %s19, 1
        %s304 = scalar_select %p303, %s19, 1
        %p305 = scmp.lt.s32.totalorder %s298, 3
        %s306 = scalar_select %p305, %s298, 3
        %s307 = smul.addr %s304, 4
        %s308 = sadd.s32 %s306, %s307
        %s309 = smul.addr %s308, 2
        %s310 = scalar_lea.vmem %s1, %s309
        %s311 = sadd.s32 %s20, 1
        %p312 = scmp.lt.s32.totalorder %s311, 0
        %s313 = scalar_select %p312, %s311, 0
        %s314 = smul.u32 3, %s313
        %s315 = ssub.s32 4, %s314
        %p316 = scmp.lt.s32.totalorder %s315, 3
        %s317 = scalar_select %p316, %s315, 3
        %s318 = smul.u32 32, %s317
        %s319 = sadd.s32 %s19, %s20
        %s320 = smul.u32 3, %s319
        %v322 = vld [vmem:[%s289] sm:$0x3f]
        %323 = vst [vmem:[#allocation2] sm:$0x3f] %v322
        %v324 = vld [vmem:[%s310] sm:$0x3f]
        %325 = vst [vmem:[#allocation2 + $0x6] sm:$0x3f] %v324
        %v326 = vld [vmem:[#allocation2] sm:$0x3f]
        %v328 = vcombine.high %v326, %v326
        %v330 = vunpack.c.l.s4 1983009808
        %v331 = vunpack.c.0.s8 %v330
        %v332 = vlaneseq
        %v333 = vshrl.u32 %v332, 7
        %v334 = vsub.s32 %v331, %v333
        %v335 = vrot.slane %v326, %v334
        %v337 = vunpack.c.l.s4 1983009808
        %v338 = vunpack.c.0.s8 %v337
        %v339 = vlaneseq
        %v340 = vshrl.u32 %v339, 7
        %v341 = vsub.s32 %v338, %v340
        %v342 = vrot.slane %v328, %v341
        %345 = vst [vmem:[#allocation3] sm:$0x33] %v335
        %346 = vst [vmem:[#allocation3 + $0x8] sm:$0x3] %v342
        %v347 = vld [vmem:[#allocation2] sm:$0xff]
        %v349 = vcombine.low %v347, %v347
        %v351 = vunpack.c.l.s4 1983009808
        %v352 = vunpack.c.0.s8 %v351
        %v353 = vlaneseq
        %v354 = vshrl.u32 %v353, 7
        %v355 = vsub.s32 %v352, %v354
        %v356 = vrot.slane %v349, %v355
        %v358 = vunpack.c.l.s4 1983009808
        %v359 = vunpack.c.0.s8 %v358
        %v360 = vlaneseq
        %v361 = vshrl.u32 %v360, 7
        %v362 = vsub.s32 %v359, %v361
        %v363 = vrot.slane %v347, %v362
        %364 = vrot.lane.b32.xlu0 %v356, 127
        %v365 = vpop.permute.xlu0 %364
        %366 = vrot.lane.b32.xlu0 %v363, 127
        %v367 = vpop.permute.xlu0 %366
        %v368 = vrot.slane %v365, 4
        %v369 = vrot.slane %v367, 4
        %vm370 = vcmask 1043456
        %v371 = vsel %vm370, %v368, %v369
        %vm372 = vcmask 1039360
        %v373 = vsel %vm372, %v365, %v371
        %v374 = vsel %vm372, %v367, %v369
        %377 = vst [vmem:[#allocation3] sm:$0xcc] %v373
        %378 = vst [vmem:[#allocation3 + $0x8] sm:$0xc] %v374
        %v379 = vld [vmem:[#allocation2] sm:$0xff]
        %v381 = vcombine.high %v379, %v379
        %v383 = vunpack.c.l.s4 1983009808
        %v384 = vunpack.c.0.s8 %v383
        %v385 = vlaneseq
        %v386 = vshrl.u32 %v385, 7
        %v387 = vsub.s32 %v384, %v386
        %v388 = vrot.slane %v379, %v387
        %v390 = vunpack.c.l.s4 1983009808
        %v391 = vunpack.c.0.s8 %v390
        %v392 = vlaneseq
        %v393 = vshrl.u32 %v392, 7
        %v394 = vsub.s32 %v391, %v393
        %v395 = vrot.slane %v381, %v394
        %396 = vrot.lane.b32.xlu0 %v388, 126
        %v397 = vpop.permute.xlu0 %396
        %398 = vrot.lane.b32.xlu0 %v395, 126
        %v399 = vpop.permute.xlu0 %398
        %v400 = vrot.slane %v397, 4
        %v401 = vrot.slane %v399, 4
        %v402 = vsel %vm370, %v400, %v401
        %vm403 = vcmask 1031168
        %v404 = vsel %vm403, %v397, %v402
        %v405 = vsel %vm403, %v399, %v401
        %408 = vst [vmem:[#allocation3 + $0xc] sm:$0x33] %v404
        %409 = vst [vmem:[#allocation3 + $0x14] sm:$0x3] %v405
        %v410 = vld [vmem:[#allocation2] sm:$0xff]
        %v412 = vcombine.low %v410, %v410
        %v414 = vunpack.c.l.s4 1983009808
        %v415 = vunpack.c.0.s8 %v414
        %v416 = vlaneseq
        %v417 = vshrl.u32 %v416, 7
        %v418 = vsub.s32 %v415, %v417
        %v419 = vrot.slane %v412, %v418
        %v421 = vunpack.c.l.s4 1983009808
        %v422 = vunpack.c.0.s8 %v421
        %v423 = vlaneseq
        %v424 = vshrl.u32 %v423, 7
        %v425 = vsub.s32 %v422, %v424
        %v426 = vrot.slane %v410, %v425
        %427 = vrot.lane.b32.xlu0 %v419, 110
        %v428 = vpop.permute.xlu0 %427
        %429 = vrot.lane.b32.xlu0 %v426, 110
        %v430 = vpop.permute.xlu0 %429
        %v431 = vrot.slane %v428, 4
        %v432 = vrot.slane %v430, 4
        %v433 = vsel %vm370, %v431, %v432
        %vm434 = vcmask 900096
        %v435 = vsel %vm434, %v428, %v433
        %v436 = vsel %vm434, %v430, %v432
        %439 = vst [vmem:[#allocation3 + $0xc] sm:$0xcc] %v435
        %440 = vst [vmem:[#allocation3 + $0x14] sm:$0xc] %v436
        %v441 = vld [vmem:[#allocation2] sm:$0xff]
        %v443 = vcombine.high %v441, %v441
        %v445 = vunpack.c.l.s4 1983009808
        %v446 = vunpack.c.0.s8 %v445
        %v447 = vlaneseq
        %v448 = vshrl.u32 %v447, 7
        %v449 = vsub.s32 %v446, %v448
        %v450 = vrot.slane %v441, %v449
        %v452 = vunpack.c.l.s4 1983009808
        %v453 = vunpack.c.0.s8 %v452
        %v454 = vlaneseq
        %v455 = vshrl.u32 %v454, 7
        %v456 = vsub.s32 %v453, %v455
        %v457 = vrot.slane %v443, %v456
        %458 = vrot.lane.b32.xlu0 %v450, 109
        %v459 = vpop.permute.xlu0 %458
        %460 = vrot.lane.b32.xlu0 %v457, 109
        %v461 = vpop.permute.xlu0 %460
        %v462 = vrot.slane %v459, 4
        %v463 = vrot.slane %v461, 4
        %v464 = vsel %vm370, %v462, %v463
        %vm465 = vcmask 891904
        %v466 = vsel %vm465, %v459, %v464
        %v467 = vsel %vm465, %v461, %v463
        %470 = vst [vmem:[#allocation3 + $0x18] sm:$0x33] %v466
        %471 = vst [vmem:[#allocation3 + $0x20] sm:$0x3] %v467
        %v472 = vld [vmem:[#allocation2] sm:$0xff]
        %v474 = vcombine.low %v472, %v472
        %v476 = vunpack.c.l.s4 1983009808
        %v477 = vunpack.c.0.s8 %v476
        %v478 = vlaneseq
        %v479 = vshrl.u32 %v478, 7
        %v480 = vsub.s32 %v477, %v479
        %v481 = vrot.slane %v474, %v480
        %v483 = vunpack.c.l.s4 1983009808
        %v484 = vunpack.c.0.s8 %v483
        %v485 = vlaneseq
        %v486 = vshrl.u32 %v485, 7
        %v487 = vsub.s32 %v484, %v486
        %v488 = vrot.slane %v472, %v487
        %489 = vrot.lane.b32.xlu0 %v481, 108
        %v490 = vpop.permute.xlu0 %489
        %491 = vrot.lane.b32.xlu0 %v488, 108
        %v492 = vpop.permute.xlu0 %491
        %v493 = vrot.slane %v490, 4
        %v494 = vrot.slane %v492, 4
        %v495 = vsel %vm370, %v493, %v494
        %vm496 = vcmask 883712
        %v497 = vsel %vm496, %v490, %v495
        %v498 = vsel %vm496, %v492, %v494
        %501 = vst [vmem:[#allocation3 + $0x18] sm:$0xcc] %v497
        %502 = vst [vmem:[#allocation3 + $0x20] sm:$0xc] %v498
        %v503 = vld [vmem:[#allocation2] sm:$0xff]
        %v505 = vcombine.high %v503, %v503
        %v507 = vunpack.c.l.s4 1983009808
        %v508 = vunpack.c.0.s8 %v507
        %v509 = vlaneseq
        %v510 = vshrl.u32 %v509, 7
        %v511 = vsub.s32 %v508, %v510
        %v512 = vrot.slane %v503, %v511
        %v514 = vunpack.c.l.s4 1983009808
        %v515 = vunpack.c.0.s8 %v514
        %v516 = vlaneseq
        %v517 = vshrl.u32 %v516, 7
        %v518 = vsub.s32 %v515, %v517
        %v519 = vrot.slane %v505, %v518
        %520 = vrot.lane.b32.xlu0 %v512, 92
        %v521 = vpop.permute.xlu0 %520
        %522 = vrot.lane.b32.xlu0 %v519, 92
        %v523 = vpop.permute.xlu0 %522
        %v524 = vrot.slane %v521, 4
        %v525 = vrot.slane %v523, 4
        %v526 = vsel %vm370, %v524, %v525
        %vm527 = vcmask 752640
        %v528 = vsel %vm527, %v521, %v526
        %v529 = vsel %vm527, %v523, %v525
        %532 = vst [vmem:[#allocation3 + $0x24] sm:$0x33] %v528
        %533 = vst [vmem:[#allocation3 + $0x2c] sm:$0x3] %v529
        %v534 = vld [vmem:[#allocation2] sm:$0xff]
        %v536 = vcombine.low %v534, %v534
        %v538 = vunpack.c.l.s4 1983009808
        %v539 = vunpack.c.0.s8 %v538
        %v540 = vlaneseq
        %v541 = vshrl.u32 %v540, 7
        %v542 = vsub.s32 %v539, %v541
        %v543 = vrot.slane %v536, %v542
        %v545 = vunpack.c.l.s4 1983009808
        %v546 = vunpack.c.0.s8 %v545
        %v547 = vlaneseq
        %v548 = vshrl.u32 %v547, 7
        %v549 = vsub.s32 %v546, %v548
        %v550 = vrot.slane %v534, %v549
        %551 = vrot.lane.b32.xlu0 %v543, 91
        %v552 = vpop.permute.xlu0 %551
        %553 = vrot.lane.b32.xlu0 %v550, 91
        %v554 = vpop.permute.xlu0 %553
        %v555 = vrot.slane %v552, 4
        %v556 = vrot.slane %v554, 4
        %v557 = vsel %vm370, %v555, %v556
        %vm558 = vcmask 744448
        %v559 = vsel %vm558, %v552, %v557
        %v560 = vsel %vm558, %v554, %v556
        %563 = vst [vmem:[#allocation3 + $0x24] sm:$0xcc] %v559
        %564 = vst [vmem:[#allocation3 + $0x2c] sm:$0xc] %v560
        %v565 = vld [vmem:[#allocation2] sm:$0xff]
        %v567 = vcombine.high %v565, %v565
        %v569 = vunpack.c.l.s4 1983009808
        %v570 = vunpack.c.0.s8 %v569
        %v571 = vlaneseq
        %v572 = vshrl.u32 %v571, 7
        %v573 = vsub.s32 %v570, %v572
        %v574 = vrot.slane %v565, %v573
        %v576 = vunpack.c.l.s4 1983009808
        %v577 = vunpack.c.0.s8 %v576
        %v578 = vlaneseq
        %v579 = vshrl.u32 %v578, 7
        %v580 = vsub.s32 %v577, %v579
        %v581 = vrot.slane %v567, %v580
        %582 = vrot.lane.b32.xlu0 %v574, 90
        %v583 = vpop.permute.xlu0 %582
        %584 = vrot.lane.b32.xlu0 %v581, 90
        %v585 = vpop.permute.xlu0 %584
        %v586 = vrot.slane %v583, 4
        %v587 = vrot.slane %v585, 4
        %v588 = vsel %vm370, %v586, %v587
        %vm589 = vcmask 736256
        %v590 = vsel %vm589, %v583, %v588
        %v591 = vsel %vm589, %v585, %v587
        %594 = vst [vmem:[#allocation3 + $0x30] sm:$0x33] %v590
        %595 = vst [vmem:[#allocation3 + $0x38] sm:$0x3] %v591
        %v596 = vld [vmem:[%s2] sm:$0xf]
        %v597 = vld [vmem:[%s2 + $0x4] sm:$0x3]
        %v598 = vld [vmem:[#allocation3] sm:$0xff]
        %v599 = vld [vmem:[#allocation3 + $0x8] sm:$0xf]
        %v600 = vld [vmem:[#allocation3 + $0xc] sm:$0xff]
        %v601 = vld [vmem:[#allocation3 + $0x14] sm:$0xf]
        %v602 = vld [vmem:[#allocation3 + $0x18] sm:$0xff]
        %v603 = vld [vmem:[#allocation3 + $0x20] sm:$0xf]
        %v604 = vld [vmem:[#allocation3 + $0x24] sm:$0xff]
        %v605 = vld [vmem:[#allocation3 + $0x2c] sm:$0xf]
        %v606 = vld [vmem:[#allocation3 + $0x30] sm:$0x33]
        %v607 = vld [vmem:[#allocation3 + $0x38] sm:$0x3]
        %v608 = vld [vmem:[%s3] sm:$0xff]
        %v609 = vld [vmem:[%s3 + $0x8] sm:$0x7]
        %611 = vset.pattern.permute.xlu0 0
        %612 = vperm.xlu0 %611, %v608
        %v613 = vpop.permute.xlu0 %612
        %616 = vset.pattern.permute.xlu0 0
        %617 = vperm.xlu0 %616, %v609
        %v618 = vpop.permute.xlu0 %617
        %v622 = vunpack.c.l.b16 %v596
        %v623 = vunpack.c.l.b16 %v597
        %v624 = vpack.c.b16 %v623, %v622
        %v635 = vunpack.c.l.b16 %v598
        %v636 = vunpack.c.h.b16 %v598
        %v637 = vunpack.c.l.b16 %v599
        %v638 = vunpack.c.l.b16 %v600
        %v639 = vunpack.c.h.b16 %v600
        %v640 = vunpack.c.l.b16 %v601
        %v641 = vunpack.c.l.b16 %v602
        %v642 = vunpack.c.h.b16 %v602
        %v643 = vunpack.c.l.b16 %v603
        %v644 = vunpack.c.l.b16 %v604
        %v645 = vunpack.c.h.b16 %v604
        %v646 = vunpack.c.l.b16 %v605
        %v647 = vunpack.c.l.b16 %v606
        %v648 = vunpack.c.h.b16 %v606
        %v649 = vunpack.c.l.b16 %v607
        %v650 = vpack.c.b16 %v638, %v635
        %v651 = vpack.c.b16 %v639, %v636
        %v652 = vpack.c.b16 %v640, %v637
        %v653 = vpack.c.b16 %v644, %v641
        %v654 = vpack.c.b16 %v645, %v642
        %v655 = vpack.c.b16 %v646, %v643
        %v656 = vpack.c.b16 %v647, %v647
        %v657 = vpack.c.b16 %v648, %v648
        %v658 = vpack.c.b16 %v649, %v649
        %vm665 = vcmask 293888
        %v667 = vsel %vm665, %v624, 0
        %vm669 = vcmask 1041408
        %v671 = vsel %vm669, %v656, 0
        %v674 = vsel %vm669, %v657, 0
        %v677 = vsel %vm669, %v658, 0
        %679 = vmatprep.subr.bf16.mxu0 %v651
        %680 = vmatpush1.bf16.msra.mxu0 %v650
        %681 = vmatprep.subr.bf16.mxu0 %v654
        %682 = vmatpush1.bf16.msra.mxu0 %v653
        %683 = vmatprep.subr.bf16.mxu0 %v674
        %684 = vmatpush1.bf16.msra.mxu0 %v671
        %685 = vmatprep.subr.bf16.mxu0 0
        %686 = vmatpush1.bf16.msra.mxu0 0
        %687 = vmatprep.subr.bf16.mxu0 0
        %688 = vmatpush1.bf16.msra.mxu0 0
        %689 = vmatprep.subr.bf16.mxu0 0
        %690 = vmatpush1.bf16.msra.mxu0 0
        %691 = vmatprep.subr.bf16.mxu0 0
        %692 = vmatpush1.bf16.msra.mxu0 0
        %693 = vmatprep.subr.bf16.mxu0 0
        %694 = vmatpush1.bf16.msra.mxu0 0
        %695 = vmatprep.subr.bf16.mxu0 0
        %696 = vmatpush1.bf16.msra.mxu0 0
        %697 = vmatprep.subr.bf16.mxu0 0
        %698 = vmatpush1.bf16.msra.mxu0 0
        %699 = vmatprep.subr.bf16.mxu0 0
        %700 = vmatpush1.bf16.msra.mxu0 0
        %701 = vmatprep.subr.bf16.mxu0 0
        %702 = vmatpush1.bf16.msra.mxu0 0
        %703 = vmatprep.subr.bf16.mxu0 0
        %704 = vmatpush1.bf16.msra.mxu0 0
        %705 = vmatprep.subr.bf16.mxu0 0
        %706 = vmatpush1.bf16.msra.mxu0 0
        %707 = vmatprep.subr.bf16.mxu0 0
        %708 = vmatpush1.bf16.msra.mxu0 0
        %709 = vmatprep.subr.bf16.mxu0 0
        %710 = vmatpush1.bf16.msra.mxu0 0
        %711 = vmatprep.mubr.bf16.mxu0 0
        %712 = vmatmul.mubr.bf16.gmra.mrb[0].mxu0 %v667
        %v713 = vpop.f32.mrb[0].mxu0
        %v714 = vadd.f32 %v613, %v713
        %v715 = vpop.f32.mrb[0].mxu0
        %v716 = vadd.f32 %v613, %v715
        %v717 = vpop.f32.mrb[0].mxu0
        %v718 = vadd.f32 %v618, %v717
        %v719 = vpop.f32.mrb[0].mxu0
        %v720 = vadd.f32 %v618, %v719
        %721 = vdwg.mxu0
        %722 = vmatprep.subr.bf16.mxu0 0
        %723 = vmatpush1.bf16.msra.mxu0 %v652
        %724 = vmatprep.subr.bf16.mxu0 0
        %725 = vmatpush1.bf16.msra.mxu0 %v655
        %726 = vmatprep.subr.bf16.mxu0 0
        %727 = vmatpush1.bf16.msra.mxu0 %v677
        %728 = vmatprep.subr.bf16.mxu0 0
        %729 = vmatpush1.bf16.msra.mxu0 0
        %730 = vmatprep.subr.bf16.mxu0 0
        %731 = vmatpush1.bf16.msra.mxu0 0
        %732 = vmatprep.subr.bf16.mxu0 0
        %733 = vmatpush1.bf16.msra.mxu0 0
        %734 = vmatprep.subr.bf16.mxu0 0
        %735 = vmatpush1.bf16.msra.mxu0 0
        %736 = vmatprep.subr.bf16.mxu0 0
        %737 = vmatpush1.bf16.msra.mxu0 0
        %738 = vmatprep.subr.bf16.mxu0 0
        %739 = vmatpush1.bf16.msra.mxu0 0
        %740 = vmatprep.subr.bf16.mxu0 0
        %741 = vmatpush1.bf16.msra.mxu0 0
        %742 = vmatprep.subr.bf16.mxu0 0
        %743 = vmatpush1.bf16.msra.mxu0 0
        %744 = vmatprep.subr.bf16.mxu0 0
        %745 = vmatpush1.bf16.msra.mxu0 0
        %746 = vmatprep.subr.bf16.mxu0 0
        %747 = vmatpush1.bf16.msra.mxu0 0
        %748 = vmatprep.subr.bf16.mxu0 0
        %749 = vmatpush1.bf16.msra.mxu0 0
        %750 = vmatprep.subr.bf16.mxu0 0
        %751 = vmatpush1.bf16.msra.mxu0 0
        %752 = vmatprep.subr.bf16.mxu0 0
        %753 = vmatpush1.bf16.msra.mxu0 0
        %754 = vmatprep.mubr.bf16.mxu0 0
        %755 = vmatmul.mubr.bf16.gmra.mrb[0].mxu0 %v667
        %v756 = vpop.f32.mrb[0].mxu0
        %v757 = vadd.f32 %v613, %v756
        %v758 = vpop.f32.mrb[0].mxu0
        %v759 = vpop.f32.mrb[0].mxu0
        %v760 = vadd.f32 %v618, %v759
        %v761 = vpop.f32.mrb[0].mxu0
        %762 = vdwg.mxu0
        %v763 = vtanh.pop %v714
        %v764 = vtanh.pop %v716
        %v765 = vtanh.pop %v757
        %766 = vst [vmem:[%s276] sm:$0xf] %v763
        %767 = vst [vmem:[%s276 + $0x8] sm:$0xf] %v764
        %768 = vst [vmem:[%s276 + $0x10] sm:$0xf] %v765
        %769 = vst [vmem:[%s276] sm:$0xf0] %v714
        %770 = vst [vmem:[%s276 + $0x8] sm:$0xf0] %v716
        %771 = vst [vmem:[%s276 + $0x10] sm:$0xf0] %v757
        %v772 = vxor.u32 %v718, 2147483648
        %v773 = vxor.u32 %v720, 2147483648
        %v774 = vxor.u32 %v760, 2147483648
        %v775 = vmul.f32 %v772, 1.442695
        %v776 = vpow.pop %v775
        %v777 = vmul.f32 %v773, 1.442695
        %v778 = vpow.pop %v777
        %v779 = vmul.f32 %v774, 1.442695
        %v780 = vpow.pop %v779
        %v781 = vadd.f32 %v776, 1.0
        %v782 = vadd.f32 %v778, 1.0
        %v783 = vadd.f32 %v780, 1.0
        %v784 = vrcp.pop %v781
        %v785 = vmul.f32 1.0, %v784
        %v786 = vrcp.pop %v782
        %v787 = vmul.f32 1.0, %v786
        %v788 = vrcp.pop %v783
        %v789 = vmul.f32 1.0, %v788
        %v790 = vmul.f32 %v785, 8.0
        %v791 = vmul.f32 %v787, 8.0
        %v792 = vmul.f32 %v789, 8.0
        %v793 = vadd.f32 %v790, 1.0
        %v794 = vadd.f32 %v791, 1.0
        %v795 = vadd.f32 %v792, 1.0
        %796 = vst [vmem:[%s276 + $0x18] sm:$0x3] %v793
        %797 = vst [vmem:[%s276 + $0x20] sm:$0x3] %v794
        %798 = vst [vmem:[%s276 + $0x28] sm:$0x3] %v795
        %v802 = vcombine.low %v718, %v720
        %v804 = vunpack.c.l.s4 1966171168
        %v805 = vunpack.c.0.s8 %v804
        %v806 = vlaneseq
        %v807 = vshrl.u32 %v806, 7
        %v808 = vsub.s32 %v805, %v807
        %v809 = vrot.slane %v802, %v808
        %v811 = vunpack.c.l.s4 1966171168
        %v812 = vunpack.c.0.s8 %v811
        %v813 = vlaneseq
        %v814 = vshrl.u32 %v813, 7
        %v815 = vsub.s32 %v812, %v814
        %v816 = vrot.slane %v760, %v815
        %v817 = vcombine.low %v809, %v816
        %v819 = vunpack.c.l.s4 1966171168
        %v820 = vunpack.c.0.s8 %v819
        %v821 = vlaneseq
        %v822 = vshrl.u32 %v821, 7
        %v823 = vsub.s32 %v820, %v822
        %v824 = vrot.slane %v817, %v823
        %v825 = vcombine.high %v824, %v824
        %v827 = vlaneseq
        %vm828 = vcmp.ge.s32.totalorder %v827, 0
        %vm829 = vcmp.lt.s32.totalorder %v827, 384
        %vm830 = vmand %vm828, %vm829
        %s831 = scalar_lea.vmem %s276, 26 [#allocation4]
        %832 = vst.msk [vmem:[%s831] ss:$8 sm:$0x7] %vm830, %v825
        %833 = vst.msk [vmem:[%s831] ss:$8 sm:$0x0] %vm830, %v825
        %s834 = sand.u32 %s141, 1
        %s835 = sand.u32 %s141, 1
        %s836 = smul.addr %s835, 48
        %s837 = scalar_lea.vmem [#allocation4], %s836
        // Predicated region
        $region37: #{_stage_a.1} parent=35 // pred_check
          %p838 = pneg %p151
        $region38: #{_stage_a.1} parent=35 // pred_check_branch
          %840 = sbr.rel (%p838) target = $region40
        $region39: #{_stage_a.1} parent=35 // pred_region
          %s841 = sadd.s32 %s19, %s20
          %s842 = smul.u32 3, %s841
          %s843 = smul.addr %s842, 8
          %s844 = scalar_lea.vmem %s4, %s843
          // Predicated region
          $region41: #{_stage_a.1} parent=39 // pred_check
            _
          $region42: #{_stage_a.1} parent=39 // pred_check_branch
            %846 = sbr.rel (0) target = $region44
          $region43: #{_stage_a.1} parent=39 // pred_region
            // Predicated region
            $region45: #{_stage_a.1} parent=43 // pred_check
              _
            $region46: #{_stage_a.1} parent=43 // pred_check_branch
              %848 = sbr.rel (0) target = $region48
            $region47: #{_stage_a.1} parent=43 // pred_region
              loop: start=0, step=1, limit=1
              $region49: #{_stage_a.1} parent=47 // loop_pre_header
                _
              $region50: #{_stage_a.1} parent=47 // loop_header
                %s850 = sphi 0, %s854
                %p851 = scmp.ge.s32.totalorder %s850, 1
                %s855 = sphi %s837, %s837
                %s856 = sphi %s844, %s844
              $region51: #{_stage_a.1} parent=47 // loop_header_branch
                %853 = sbr.rel (%p851) target = $region55
              $region52: #{_stage_a.1} parent=47 // loop_body
                %v857 = vld [vmem:[%s855] sm:$0xff]
                %858 = vst [vmem:[%s856] sm:$0xff] %v857
                %v859 = vld [vmem:[%s855 + $0x8] sm:$0xff]
                %860 = vst [vmem:[%s856 + $0x8] sm:$0xff] %v859
                %v861 = vld [vmem:[%s855 + $0x10] sm:$0xff]
                %862 = vst [vmem:[%s856 + $0x10] sm:$0xff] %v861
                %v863 = vld [vmem:[%s855 + $0x18] sm:$0xff]
                %864 = vst [vmem:[%s856 + $0x30] sm:$0xff] %v863
                %v865 = vld [vmem:[%s855 + $0x20] sm:$0xff]
                %866 = vst [vmem:[%s856 + $0x38] sm:$0xff] %v865
                %v867 = vld [vmem:[%s855 + $0x28] sm:$0xff]
                %868 = vst [vmem:[%s856 + $0x40] sm:$0xff] %v867
              $region53: #{_stage_a.1} parent=47 // loop_footer
                %s854 = sadd.s32 1, %s850
              $region54: #{_stage_a.1} parent=47 // loop_footer_branch
                %849 = sbr.rel target = $region50
              $region55: #{_stage_a.1} parent=47 // loop_exit
                _
            $region48: #{_stage_a.1} parent=43 // pred_fallthru
              _
            // Predicated region
            $region56: #{_stage_a.1} parent=43 // pred_check
              _
            $region57: #{_stage_a.1} parent=43 // pred_check_branch
              %870 = sbr.rel target = $region59
            $region58: #{_stage_a.1} parent=43 // pred_region
              _
            $region59: #{_stage_a.1} parent=43 // pred_fallthru
              _
          $region44: #{_stage_a.1} parent=39 // pred_fallthru
            _
          %871 = vnop
        $region40: #{_stage_a.1} parent=35 // pred_fallthru
          _
      $region36: #{_stage_a.1} parent=5 // pred_fallthru
        _
      %p872 = scmp.le.s32.totalorder 2, %s10
      // Predicated region
      $region60: #{_stage_a.1} parent=5 // pred_check
        %p873 = pneg %p872
      $region61: #{_stage_a.1} parent=5 // pred_check_branch
        %875 = sbr.rel (%p873) target = $region63
      $region62: #{_stage_a.1} parent=5 // pred_region
        %s876 = ssub.s32 %s10, 2
        // Predicated region
        $region64: #{_stage_a.1} parent=62 // pred_check
          %p877 = pneg %p157
        $region65: #{_stage_a.1} parent=62 // pred_check_branch
          %879 = sbr.rel (%p877) target = $region67
        $region66: #{_stage_a.1} parent=62 // pred_region
          %s880 = sand.u32 %s142, 1
          %s881 = sand.u32 %s142, 1
          %s882 = smul.addr %s881, 48
          %s883 = scalar_lea.vmem [#allocation4], %s882
        $region67: #{_stage_a.1} parent=62 // pred_fallthru
          _
      $region63: #{_stage_a.1} parent=5 // pred_fallthru
        _
    $region6: #{_stage_a.1} parent=1 // loop_footer
      %s14 = sadd.s32 1, %s10
    $region7: #{_stage_a.1} parent=1 // loop_footer_branch
      %9 = sbr.rel target = $region3
    $region8: #{_stage_a.1} parent=1 // loop_exit
      _

</llo_original>
